<compile_context>
chip_gen: v5e
topology: v5e:2x2
jax: 0.10.0
libtpu: 0.0.40
codegen_flags: <defaults>
</compile_context>

<pallas_src>
import functools

import jax
import jax.numpy as jnp
from jax.experimental import pallas as pl
from jax.experimental.pallas import tpu as pltpu

ACTION_SIZE = 2     # CartPole action space
HEAD_PAD = 128      # lane-dense padded width for each head output
OUT_PAD = 2 * HEAD_PAD


def _round_up(n, m):
    return (n + m - 1) // m * m


def prediction_kernel(
    x_ref,
    w1_ref, b1_ref,
    w2_ref, b2_ref,
    wh_ref, bh_ref,        # fused [policy | value-hidden] projection, (64, 256)
    wv2_ref, bv2_ref,      # value output projection, (128, 128)
    out_ref,               # (TB, 256): lanes [0,128) policy, [128,256) value
    *,
    num_subtiles,
):
    tb = x_ref.shape[0]
    sub = tb // num_subtiles

    # Static unroll over independent batch sub-tiles: their MXU/EUP chains are
    # independent, so the LLO scheduler can interleave them and hide the serial
    # matmul -> relu -> matmul latency within one grid step.
    for s in range(num_subtiles):
        rows = pl.ds(s * sub, sub)

        x = x_ref[rows, :]

        # startBlock: Linear(32,64) -> ReLU -> Linear(64,64) -> ReLU
        h = jnp.dot(x, w1_ref[...], preferred_element_type=jnp.float32) + b1_ref[...]
        h = jnp.maximum(h, 0.0)
        h = jnp.dot(h, w2_ref[...], preferred_element_type=jnp.float32) + b2_ref[...]
        h = jnp.maximum(h, 0.0)

        # Fused heads: one MXU push produces policy logits (lanes [0,128)) and the
        # value-head hidden pre-activation (lanes [128,256)).
        hv = jnp.dot(h, wh_ref[...], preferred_element_type=jnp.float32) + bh_ref[...]
        p = hv[:, :HEAD_PAD]                       # policy logits (padded)
        vh = jnp.maximum(hv[:, HEAD_PAD:], 0.0)    # value hidden, ReLU (padded lanes stay 0)

        # value output: Linear(64, support) padded to (128, 128); padded K rows are 0.
        v = jnp.dot(vh, wv2_ref[...], preferred_element_type=jnp.float32) + bv2_ref[...]

        # One lane-dense output slab; both halves are 128-aligned -> unmasked stores.
        out_ref[rows, :HEAD_PAD] = p.astype(out_ref.dtype)
        out_ref[rows, HEAD_PAD:] = v.astype(out_ref.dtype)


def prediction_forward(x, padded_params, action_size, support_size, *, max_tile=512):
    """x: (B, 32) float32.  padded_params: heads already fused + zero-padded.

    Returns (policy_logits [B, action_size], value_logits [B, support_size]).
    """
    B, F = x.shape

    # Batch tile: multiple of 8 sublanes; a 512x256 f32 tile is 512 KiB, far under
    # even v7x's 64 MiB VMEM with double-buffering.
    TB = min(max_tile, _round_up(B, 8))
    B_pad = _round_up(B, TB)
    if B_pad != B:
        x = jnp.pad(x, ((0, B_pad - B), (0, 0)))

    # Unroll 2 independent sub-tiles per grid step only when the tile is big enough
    # that each sub-tile stays sublane-aligned and worth interleaving.
    num_subtiles = 2 if (TB >= 256 and TB % 16 == 0) else 1

    weight_args = (
        padded_params["w1"], padded_params["b1"],
        padded_params["w2"], padded_params["b2"],
        padded_params["wh"], padded_params["bh"],
        padded_params["wv2"], padded_params["bv2"],
    )

    def resident_spec(a):
        # Full array in one block, constant index_map -> loaded once, stays resident
        # in VMEM across all batch grid steps.
        return pl.BlockSpec(a.shape, lambda i: (0,) * a.ndim)

    grid = (B_pad // TB,)

    out = pl.pallas_call(
        functools.partial(prediction_kernel, num_subtiles=num_subtiles),
        out_shape=jax.ShapeDtypeStruct((B_pad, OUT_PAD), jnp.float32),
        grid=grid,
        in_specs=[pl.BlockSpec((TB, F), lambda i: (i, 0))]
        + [resident_spec(a) for a in weight_args],
        out_specs=pl.BlockSpec((TB, OUT_PAD), lambda i: (i, 0)),
        compiler_params=pltpu.CompilerParams(
            dimension_semantics=("parallel",),
        ),
    )(x, *weight_args)

    policy = out[:B, :action_size]
    value = out[:B, HEAD_PAD:HEAD_PAD + support_size]
    return policy, value


def init_params(key, action_size, support_size):
    """Deterministic synthetic parameter init; shapes match the nn.Module
    (weights stored transposed as (in, out), biases as (1, out))."""
    ks = jax.random.split(key, 10)

    def linear(kw, kb, fan_in, fan_out):
        bound = 1.0 / jnp.sqrt(jnp.float32(fan_in))
        w = jax.random.uniform(kw, (fan_in, fan_out), jnp.float32, -bound, bound)
        b = jax.random.uniform(kb, (1, fan_out), jnp.float32, -bound, bound)
        return w, b

    w1, b1 = linear(ks[0], ks[1], 32, 64)
    w2, b2 = linear(ks[2], ks[3], 64, 64)
    wp, bp = linear(ks[4], ks[5], 64, action_size)
    wv1, bv1 = linear(ks[6], ks[7], 64, 64)
    wv2, bv2 = linear(ks[8], ks[9], 64, support_size)
    return dict(w1=w1, b1=b1, w2=w2, b2=b2,
                wp=wp, bp=bp, wv1=wv1, bv1=bv1, wv2=wv2, bv2=bv2)


def pad_head_params(params):
    """One-time fusion + zero-padding of the head weights:
       wh  = [wp padded to 128 lanes | wv1 padded to 128 lanes]  -> (64, 256)
       bh  = matching bias concat                                 -> (1, 256)
       wv2 = value output weight padded to (128, 128) (extra K rows are zero)
       bv2 = value output bias padded to (1, 128)
    Zero padding guarantees padded lanes carry exactly 0 and are sliced off later."""
    wp, bp = params["wp"], params["bp"]
    wv1, bv1 = params["wv1"], params["bv1"]
    wv2, bv2 = params["wv2"], params["bv2"]

    wp_p = jnp.pad(wp, ((0, 0), (0, HEAD_PAD - wp.shape[1])))
    bp_p = jnp.pad(bp, ((0, 0), (0, HEAD_PAD - bp.shape[1])))
    wv1_p = jnp.pad(wv1, ((0, 0), (0, HEAD_PAD - wv1.shape[1])))
    bv1_p = jnp.pad(bv1, ((0, 0), (0, HEAD_PAD - bv1.shape[1])))

    wh = jnp.concatenate([wp_p, wv1_p], axis=1)     # (64, 256)
    bh = jnp.concatenate([bp_p, bv1_p], axis=1)     # (1, 256)

    wv2_p = jnp.pad(wv2, ((0, HEAD_PAD - wv2.shape[0]), (0, HEAD_PAD - wv2.shape[1])))
    bv2_p = jnp.pad(bv2, ((0, 0), (0, HEAD_PAD - bv2.shape[1])))

    return dict(w1=params["w1"], b1=params["b1"],
                w2=params["w2"], b2=params["b2"],
                wh=wh, bh=bh, wv2=wv2_p, bv2=bv2_p)


def reference_forward(x, p):
    h = jnp.maximum(x @ p["w1"] + p["b1"], 0.0)
    h = jnp.maximum(h @ p["w2"] + p["b2"], 0.0)
    pol = h @ p["wp"] + p["bp"]
    vh = jnp.maximum(h @ p["wv1"] + p["bv1"], 0.0)
    val = vh @ p["wv2"] + p["bv2"]
    return pol, val


if __name__ == "__main__":
    SUPPORT_SIZE = 21   # value_support.size
    B = 8

    key = jax.random.PRNGKey(0)
    kx, kp = jax.random.split(key)
    x = jax.random.normal(kx, (B, 32), jnp.float32)

    params = init_params(kp, ACTION_SIZE, SUPPORT_SIZE)
    padded_params = pad_head_params(params)

    fwd = jax.jit(lambda xx, pp: prediction_forward(xx, pp, ACTION_SIZE, SUPPORT_SIZE))
    policy, value = fwd(x, padded_params)
    policy, value = jax.block_until_ready((policy, value))

    p_ref, v_ref = reference_forward(x, params)
    assert policy.shape == (B, ACTION_SIZE) and value.shape == (B, SUPPORT_SIZE)
    assert jnp.allclose(policy, p_ref, atol=1e-5, rtol=1e-5)
    assert jnp.allclose(value, v_ref, atol=1e-5, rtol=1e-5)

    print("KERNEL_OK")
</pallas_src>

<mosaic_0001>
module attributes {stable_mosaic.version = 11 : i64} {
  func.func @prediction_kernel(%arg0: i32, %arg1: memref<8x32xf32, #tpu.memory_space<vmem>>, %arg2: memref<32x64xf32, #tpu.memory_space<vmem>>, %arg3: memref<1x64xf32, #tpu.memory_space<vmem>>, %arg4: memref<64x64xf32, #tpu.memory_space<vmem>>, %arg5: memref<1x64xf32, #tpu.memory_space<vmem>>, %arg6: memref<64x256xf32, #tpu.memory_space<vmem>>, %arg7: memref<1x256xf32, #tpu.memory_space<vmem>>, %arg8: memref<128x128xf32, #tpu.memory_space<vmem>>, %arg9: memref<1x128xf32, #tpu.memory_space<vmem>>, %arg10: memref<8x256xf32, #tpu.memory_space<vmem>>) attributes {dimension_semantics = [#tpu.dimension_semantics<parallel>], iteration_bounds = array<i64: 1>, scalar_prefetch = 0 : i64, scratch_operands = 0 : i64, tpu.core_type = #tpu.core_type<tc>, window_params = [{transform_indices = @transform_0, window_bounds = array<i64: 8, 32>}, {pipeline_mode = #tpu.pipeline_mode<synchronous>, transform_indices = @transform_1, window_bounds = array<i64: 32, 64>}, {pipeline_mode = #tpu.pipeline_mode<synchronous>, transform_indices = @transform_2, window_bounds = array<i64: 1, 64>}, {pipeline_mode = #tpu.pipeline_mode<synchronous>, transform_indices = @transform_3, window_bounds = array<i64: 64, 64>}, {pipeline_mode = #tpu.pipeline_mode<synchronous>, transform_indices = @transform_4, window_bounds = array<i64: 1, 64>}, {pipeline_mode = #tpu.pipeline_mode<synchronous>, transform_indices = @transform_5, window_bounds = array<i64: 64, 256>}, {pipeline_mode = #tpu.pipeline_mode<synchronous>, transform_indices = @transform_6, window_bounds = array<i64: 1, 256>}, {pipeline_mode = #tpu.pipeline_mode<synchronous>, transform_indices = @transform_7, window_bounds = array<i64: 128, 128>}, {pipeline_mode = #tpu.pipeline_mode<synchronous>, transform_indices = @transform_8, window_bounds = array<i64: 1, 128>}, {transform_indices = @transform_9, window_bounds = array<i64: 8, 256>}]} {
    %c0 = arith.constant 0 : index
    %c0_0 = arith.constant 0 : index
    %0 = vector.load %arg1[%c0, %c0_0] : memref<8x32xf32, #tpu.memory_space<vmem>>, vector<8x32xf32>
    %c0_1 = arith.constant 0 : index
    %c0_2 = arith.constant 0 : index
    %1 = vector.load %arg2[%c0_1, %c0_2] : memref<32x64xf32, #tpu.memory_space<vmem>>, vector<32x64xf32>
    %cst = arith.constant dense<0.000000e+00> : vector<8x64xf32>
    %2 = tpu.matmul %0, %1, %cst {dimension_numbers = #tpu.dot_dimension_numbers<[1], [0], [0], [1], [0, 0, 1, 1], [], []>} : vector<8x32xf32>, vector<32x64xf32>, vector<8x64xf32> -> vector<8x64xf32>
    %c0_3 = arith.constant 0 : index
    %c0_4 = arith.constant 0 : index
    %3 = vector.load %arg3[%c0_3, %c0_4] : memref<1x64xf32, #tpu.memory_space<vmem>>, vector<1x64xf32>
    %4 = vector.broadcast %3 : vector<1x64xf32> to vector<8x64xf32>
    %5 = arith.addf %2, %4 : vector<8x64xf32>
    %cst_5 = arith.constant 0.000000e+00 : f32
    %6 = vector.broadcast %cst_5 : f32 to vector<8x64xf32>
    %7 = arith.maximumf %5, %6 : vector<8x64xf32>
    %c0_6 = arith.constant 0 : index
    %c0_7 = arith.constant 0 : index
    %8 = vector.load %arg4[%c0_6, %c0_7] : memref<64x64xf32, #tpu.memory_space<vmem>>, vector<64x64xf32>
    %cst_8 = arith.constant dense<0.000000e+00> : vector<8x64xf32>
    %9 = tpu.matmul %7, %8, %cst_8 {dimension_numbers = #tpu.dot_dimension_numbers<[1], [0], [0], [1], [0, 0, 1, 1], [], []>} : vector<8x64xf32>, vector<64x64xf32>, vector<8x64xf32> -> vector<8x64xf32>
    %c0_9 = arith.constant 0 : index
    %c0_10 = arith.constant 0 : index
    %10 = vector.load %arg5[%c0_9, %c0_10] : memref<1x64xf32, #tpu.memory_space<vmem>>, vector<1x64xf32>
    %11 = vector.broadcast %10 : vector<1x64xf32> to vector<8x64xf32>
    %12 = arith.addf %9, %11 : vector<8x64xf32>
    %cst_11 = arith.constant 0.000000e+00 : f32
    %13 = vector.broadcast %cst_11 : f32 to vector<8x64xf32>
    %14 = arith.maximumf %12, %13 : vector<8x64xf32>
    %c0_12 = arith.constant 0 : index
    %c0_13 = arith.constant 0 : index
    %15 = vector.load %arg6[%c0_12, %c0_13] : memref<64x256xf32, #tpu.memory_space<vmem>>, vector<64x256xf32>
    %cst_14 = arith.constant dense<0.000000e+00> : vector<8x256xf32>
    %16 = tpu.matmul %14, %15, %cst_14 {dimension_numbers = #tpu.dot_dimension_numbers<[1], [0], [0], [1], [0, 0, 1, 1], [], []>} : vector<8x64xf32>, vector<64x256xf32>, vector<8x256xf32> -> vector<8x256xf32>
    %c0_15 = arith.constant 0 : index
    %c0_16 = arith.constant 0 : index
    %17 = vector.load %arg7[%c0_15, %c0_16] : memref<1x256xf32, #tpu.memory_space<vmem>>, vector<1x256xf32>
    %18 = vector.broadcast %17 : vector<1x256xf32> to vector<8x256xf32>
    %19 = arith.addf %16, %18 : vector<8x256xf32>
    %20 = vector.extract_strided_slice %19 {offsets = [0, 0], sizes = [8, 128], strides = [1, 1]} : vector<8x256xf32> to vector<8x128xf32>
    %21 = vector.extract_strided_slice %19 {offsets = [0, 128], sizes = [8, 128], strides = [1, 1]} : vector<8x256xf32> to vector<8x128xf32>
    %cst_17 = arith.constant 0.000000e+00 : f32
    %22 = vector.broadcast %cst_17 : f32 to vector<8x128xf32>
    %23 = arith.maximumf %21, %22 : vector<8x128xf32>
    %c0_18 = arith.constant 0 : index
    %c0_19 = arith.constant 0 : index
    %24 = vector.load %arg8[%c0_18, %c0_19] : memref<128x128xf32, #tpu.memory_space<vmem>>, vector<128x128xf32>
    %cst_20 = arith.constant dense<0.000000e+00> : vector<8x128xf32>
    %25 = tpu.matmul %23, %24, %cst_20 {dimension_numbers = #tpu.dot_dimension_numbers<[1], [0], [0], [1], [0, 0, 1, 1], [], []>} : vector<8x128xf32>, vector<128x128xf32>, vector<8x128xf32> -> vector<8x128xf32>
    %c0_21 = arith.constant 0 : index
    %c0_22 = arith.constant 0 : index
    %26 = vector.load %arg9[%c0_21, %c0_22] : memref<1x128xf32, #tpu.memory_space<vmem>>, vector<1x128xf32>
    %27 = vector.broadcast %26 : vector<1x128xf32> to vector<8x128xf32>
    %28 = arith.addf %25, %27 : vector<8x128xf32>
    %c0_23 = arith.constant 0 : index
    %c0_24 = arith.constant 0 : index
    %29 = vector.load %arg10[%c0_23, %c0_24] : memref<8x256xf32, #tpu.memory_space<vmem>>, vector<8x128xf32>
    tpu.vector_store %arg10[%c0_23, %c0_24], %20 {strides = array<i32>} : memref<8x256xf32, #tpu.memory_space<vmem>>, vector<8x128xf32>,
    %c0_25 = arith.constant 0 : index
    %c128 = arith.constant 128 : index
    %30 = vector.load %arg10[%c0_25, %c128] : memref<8x256xf32, #tpu.memory_space<vmem>>, vector<8x128xf32>
    tpu.vector_store %arg10[%c0_25, %c128], %28 {strides = array<i32>} : memref<8x256xf32, #tpu.memory_space<vmem>>, vector<8x128xf32>,
    return
  }
  func.func @transform_0(%arg0: i32) -> (i32, i32) {
    %c0_i32 = arith.constant 0 : i32
    %c0_i32_0 = arith.constant 0 : i32
    return %arg0, %c0_i32 : i32, i32
  }
  func.func @transform_1(%arg0: i32) -> (i32, i32) {
    %c0_i32 = arith.constant 0 : i32
    %c0_i32_0 = arith.constant 0 : i32
    %c0_i32_1 = arith.constant 0 : i32
    return %c0_i32, %c0_i32_0 : i32, i32
  }
  func.func @transform_2(%arg0: i32) -> (i32, i32) {
    %c0_i32 = arith.constant 0 : i32
    %c0_i32_0 = arith.constant 0 : i32
    %c0_i32_1 = arith.constant 0 : i32
    return %c0_i32, %c0_i32_0 : i32, i32
  }
  func.func @transform_3(%arg0: i32) -> (i32, i32) {
    %c0_i32 = arith.constant 0 : i32
    %c0_i32_0 = arith.constant 0 : i32
    %c0_i32_1 = arith.constant 0 : i32
    return %c0_i32, %c0_i32_0 : i32, i32
  }
  func.func @transform_4(%arg0: i32) -> (i32, i32) {
    %c0_i32 = arith.constant 0 : i32
    %c0_i32_0 = arith.constant 0 : i32
    %c0_i32_1 = arith.constant 0 : i32
    return %c0_i32, %c0_i32_0 : i32, i32
  }
  func.func @transform_5(%arg0: i32) -> (i32, i32) {
    %c0_i32 = arith.constant 0 : i32
    %c0_i32_0 = arith.constant 0 : i32
    %c0_i32_1 = arith.constant 0 : i32
    return %c0_i32, %c0_i32_0 : i32, i32
  }
  func.func @transform_6(%arg0: i32) -> (i32, i32) {
    %c0_i32 = arith.constant 0 : i32
    %c0_i32_0 = arith.constant 0 : i32
    %c0_i32_1 = arith.constant 0 : i32
    return %c0_i32, %c0_i32_0 : i32, i32
  }
  func.func @transform_7(%arg0: i32) -> (i32, i32) {
    %c0_i32 = arith.constant 0 : i32
    %c0_i32_0 = arith.constant 0 : i32
    %c0_i32_1 = arith.constant 0 : i32
    return %c0_i32, %c0_i32_0 : i32, i32
  }
  func.func @transform_8(%arg0: i32) -> (i32, i32) {
    %c0_i32 = arith.constant 0 : i32
    %c0_i32_0 = arith.constant 0 : i32
    %c0_i32_1 = arith.constant 0 : i32
    return %c0_i32, %c0_i32_0 : i32, i32
  }
  func.func @transform_9(%arg0: i32) -> (i32, i32) {
    %c0_i32 = arith.constant 0 : i32
    %c0_i32_0 = arith.constant 0 : i32
    return %arg0, %c0_i32 : i32, i32
  }
}

</mosaic_0001>

<llo_original>
// kernel: _lambda_.1
$region0: #{_lambda_.1}
  #allocation0 [shape = 'u32[]', space=smem, size = 0x4, offset = 0x4, fixed_abs, tag = 'smem constant byte address 0x4 - core index']
  #allocation1 [shape = 'u32[72,128]{1,0:T(1,128)}', space=vmem, size = 0x9000, scoped, tag = 'internal scratch']
  %s0 = inlined_call_operand.hbm [shape: f32[8,32], index: 0, kind: input, shape index: {}]
  %s1 = inlined_call_operand.hbm [shape: f32[32,64], index: 1, kind: input, shape index: {}]
  %s2 = inlined_call_operand.vmem [shape: f32[1,64], index: 2, kind: input, shape index: {}]
  %s3 = inlined_call_operand.hbm [shape: f32[64,64], index: 3, kind: input, shape index: {}]
  %s4 = inlined_call_operand.vmem [shape: f32[1,64], index: 4, kind: input, shape index: {}]
  %s5 = inlined_call_operand.hbm [shape: f32[64,256], index: 5, kind: input, shape index: {}]
  %s6 = inlined_call_operand.vmem [shape: f32[1,256], index: 6, kind: input, shape index: {}]
  %s7 = inlined_call_operand.hbm [shape: f32[128,128], index: 7, kind: input, shape index: {}]
  %s8 = inlined_call_operand.hbm [shape: f32[1,128], index: 8, kind: input, shape index: {}]
  %s9 = inlined_call_operand.vmem [shape: f32[8,256], index: 9, kind: output, shape index: {}]
  %s10 = sld [smem:[#allocation0]]
  $region70: #{_lambda_.1} parent=0
    _
  %s12 = ssub.s32 1, %s10
  %s13 = scalar_select 0, %s12, %s10
  $region1: #{_lambda_.1} parent=0
    #allocation2 [shape = 'u8[4096]{0}', space=vmem, size = 0x1000, scoped, tag = 'input window, operand 0, single buffered']
    #allocation3 [shape = 's32[1]{0}', space=sflag, size = 0x4, scoped, tag = 'scoped memory for _lambda_.1']
    #allocation4 [shape = 'u8[16384]{0}', space=vmem, size = 0x4000, scoped, tag = 'input window, operand 1, single buffered']
    #allocation5 [shape = 's32[1]{0}', space=sflag, size = 0x4, scoped, tag = 'scoped memory for _lambda_.1']
    #allocation6 [shape = 'u8[32768]{0}', space=vmem, size = 0x8000, scoped, tag = 'input window, operand 3, single buffered']
    #allocation7 [shape = 'u8[65536]{0}', space=vmem, size = 0x10000, scoped, tag = 'input window, operand 5, single buffered']
    #allocation8 [shape = 's32[1]{0}', space=sflag, size = 0x4, scoped, tag = 'scoped memory for _lambda_.1']
    #allocation9 [shape = 'u8[65536]{0}', space=vmem, size = 0x10000, scoped, tag = 'input window, operand 7, single buffered']
    #allocation10 [shape = 'u8[512]{0}', space=vmem, size = 0x400, scoped, tag = 'input window, operand 8, single buffered']
    #allocation11 [shape = 's32[1]{0}', space=sflag, size = 0x4, scoped, tag = 'scoped memory for _lambda_.1']
    %14 = vsyncpa [#allocation3], 0
    %15 = vsyncpa [#allocation5], 0
    %16 = vsyncpa [#allocation8], 0
    %17 = vsyncpa [#allocation11], 0
    // Predicated region
    $region2: #{_lambda_.1} parent=1 // pred_check
      _
    $region3: #{_lambda_.1} parent=1 // pred_check_branch
      %19 = sbr.rel (0) target = $region5
    $region4: #{_lambda_.1} parent=1 // pred_region
      %21 = vsyncadd [#allocation3], 0
      %s23 = sshll.u32 %s0, 4
      %s24 = int_to_ptr.hbm [resolvable:$true] %s23
      %s25 = sshll.u32 [#allocation2], 4
      %s26 = int_to_ptr.vmem [resolvable:$true] %s25
      %28 = dma.hbm_to_vmem [thread:$0]  %s24, 128, %s26, [#allocation3]
    $region5: #{_lambda_.1} parent=1 // pred_fallthru
      _
    // Predicated region
    $region6: #{_lambda_.1} parent=1 // pred_check
      _
    $region7: #{_lambda_.1} parent=1 // pred_check_branch
      %30 = sbr.rel (0) target = $region9
    $region8: #{_lambda_.1} parent=1 // pred_region
      %32 = vsyncadd [#allocation5], 0
      %s33 = sshll.u32 %s1, 4
      %s34 = int_to_ptr.hbm [resolvable:$true] %s33
      %s35 = sshll.u32 [#allocation4], 4
      %s36 = int_to_ptr.vmem [resolvable:$true] %s35
      %41 = dma.hbm_to_vmem [thread:$0]  %s34, 512, %s36, [#allocation5], 128, 128, 8
    $region9: #{_lambda_.1} parent=1 // pred_fallthru
      _
    // Predicated region
    $region10: #{_lambda_.1} parent=1 // pred_check
      _
    $region11: #{_lambda_.1} parent=1 // pred_check_branch
      %43 = sbr.rel (0) target = $region13
    $region12: #{_lambda_.1} parent=1 // pred_region
      _
    $region13: #{_lambda_.1} parent=1 // pred_fallthru
      _
    // Predicated region
    $region14: #{_lambda_.1} parent=1 // pred_check
      _
    $region15: #{_lambda_.1} parent=1 // pred_check_branch
      %45 = sbr.rel (0) target = $region17
    $region16: #{_lambda_.1} parent=1 // pred_region
      %47 = vsyncadd [#allocation5], 0
      %s48 = sshll.u32 %s3, 4
      %s49 = int_to_ptr.hbm [resolvable:$true] %s48
      %s50 = sshll.u32 [#allocation6], 4
      %s51 = int_to_ptr.vmem [resolvable:$true] %s50
      %56 = dma.hbm_to_vmem [thread:$0]  %s49, 1024, %s51, [#allocation5], 128, 128, 8
    $region17: #{_lambda_.1} parent=1 // pred_fallthru
      _
    // Predicated region
    $region18: #{_lambda_.1} parent=1 // pred_check
      _
    $region19: #{_lambda_.1} parent=1 // pred_check_branch
      %58 = sbr.rel (0) target = $region21
    $region20: #{_lambda_.1} parent=1 // pred_region
      _
    $region21: #{_lambda_.1} parent=1 // pred_fallthru
      _
    // Predicated region
    $region22: #{_lambda_.1} parent=1 // pred_check
      _
    $region23: #{_lambda_.1} parent=1 // pred_check_branch
      %60 = sbr.rel (0) target = $region25
    $region24: #{_lambda_.1} parent=1 // pred_region
      %62 = vsyncadd [#allocation8], 0
      %s63 = sshll.u32 %s5, 4
      %s64 = int_to_ptr.hbm [resolvable:$true] %s63
      %s65 = sshll.u32 [#allocation7], 4
      %s66 = int_to_ptr.vmem [resolvable:$true] %s65
      %71 = dma.hbm_to_vmem [thread:$0]  %s64, 2048, %s66, [#allocation8], 256, 256, 16
    $region25: #{_lambda_.1} parent=1 // pred_fallthru
      _
    // Predicated region
    $region26: #{_lambda_.1} parent=1 // pred_check
      _
    $region27: #{_lambda_.1} parent=1 // pred_check_branch
      %73 = sbr.rel (0) target = $region29
    $region28: #{_lambda_.1} parent=1 // pred_region
      _
    $region29: #{_lambda_.1} parent=1 // pred_fallthru
      _
    // Predicated region
    $region30: #{_lambda_.1} parent=1 // pred_check
      _
    $region31: #{_lambda_.1} parent=1 // pred_check_branch
      %75 = sbr.rel (0) target = $region33
    $region32: #{_lambda_.1} parent=1 // pred_region
      %77 = vsyncadd [#allocation8], 0
      %s78 = sshll.u32 %s7, 4
      %s79 = int_to_ptr.hbm [resolvable:$true] %s78
      %s80 = sshll.u32 [#allocation9], 4
      %s81 = int_to_ptr.vmem [resolvable:$true] %s80
      %86 = dma.hbm_to_vmem [thread:$0]  %s79, 2048, %s81, [#allocation8], 128, 128, 8
    $region33: #{_lambda_.1} parent=1 // pred_fallthru
      _
    // Predicated region
    $region34: #{_lambda_.1} parent=1 // pred_check
      _
    $region35: #{_lambda_.1} parent=1 // pred_check_branch
      %88 = sbr.rel (0) target = $region37
    $region36: #{_lambda_.1} parent=1 // pred_region
      %90 = vsyncadd [#allocation11], 0
      %s92 = sshll.u32 %s8, 4
      %s93 = int_to_ptr.hbm [resolvable:$true] %s92
      %s94 = sshll.u32 [#allocation10], 4
      %s95 = int_to_ptr.vmem [resolvable:$true] %s94
      %97 = dma.hbm_to_vmem [thread:$0]  %s93, 16, %s95, [#allocation11]
    $region37: #{_lambda_.1} parent=1 // pred_fallthru
      _
    // Predicated region
    $region38: #{_lambda_.1} parent=1 // pred_check
      _
    $region39: #{_lambda_.1} parent=1 // pred_check_branch
      %99 = sbr.rel (0) target = $region41
    $region40: #{_lambda_.1} parent=1 // pred_region
      %101 = dma.done [#allocation3], 128
    $region41: #{_lambda_.1} parent=1 // pred_fallthru
      _
    // Predicated region
    $region42: #{_lambda_.1} parent=1 // pred_check
      _
    $region43: #{_lambda_.1} parent=1 // pred_check_branch
      %103 = sbr.rel (0) target = $region45
    $region44: #{_lambda_.1} parent=1 // pred_region
      %105 = dma.done [#allocation5], 512
    $region45: #{_lambda_.1} parent=1 // pred_fallthru
      _
    // Predicated region
    $region46: #{_lambda_.1} parent=1 // pred_check
      _
    $region47: #{_lambda_.1} parent=1 // pred_check_branch
      %107 = sbr.rel (0) target = $region49
    $region48: #{_lambda_.1} parent=1 // pred_region
      %109 = dma.done [#allocation5], 1024
    $region49: #{_lambda_.1} parent=1 // pred_fallthru
      _
    // Predicated region
    $region50: #{_lambda_.1} parent=1 // pred_check
      _
    $region51: #{_lambda_.1} parent=1 // pred_check_branch
      %111 = sbr.rel (0) target = $region53
    $region52: #{_lambda_.1} parent=1 // pred_region
      %113 = dma.done [#allocation8], 2048
    $region53: #{_lambda_.1} parent=1 // pred_fallthru
      _
    // Predicated region
    $region54: #{_lambda_.1} parent=1 // pred_check
      _
    $region55: #{_lambda_.1} parent=1 // pred_check_branch
      %115 = sbr.rel (0) target = $region57
    $region56: #{_lambda_.1} parent=1 // pred_region
      %117 = dma.done [#allocation8], 2048
    $region57: #{_lambda_.1} parent=1 // pred_fallthru
      _
    // Predicated region
    $region58: #{_lambda_.1} parent=1 // pred_check
      _
    $region59: #{_lambda_.1} parent=1 // pred_check_branch
      %119 = sbr.rel (0) target = $region61
    $region60: #{_lambda_.1} parent=1 // pred_region
      %121 = dma.done [#allocation11], 16
    $region61: #{_lambda_.1} parent=1 // pred_fallthru
      _
    %v122 = vld [vmem:[#allocation2] sm:$0xff]
    %v123 = vld [vmem:[#allocation4] sm:$0xff]
    %v124 = vld [vmem:[#allocation4 + $0x8] sm:$0xff]
    %v125 = vld [vmem:[#allocation4 + $0x10] sm:$0xff]
    %v126 = vld [vmem:[#allocation4 + $0x18] sm:$0xff]
    %v127 = vld [vmem:[%s2] sm:$0x1]
    %v129 = vperm.slane %v127, 0
    %vm131 = vcmask 261120
    %v133 = vsel %vm131, %v122, 0
    %135 = vmatpush.msra.mxu0 0.0
    %136 = vmatpush.msra.mxu0 0.0
    %137 = vmatpush.msra.mxu0 0.0
    %138 = vmatpush.msra.mxu0 0.0
    %139 = vmatpush.msra.mxu0 0.0
    %140 = vmatpush.msra.mxu0 0.0
    %141 = vmatpush.msra.mxu0 0.0
    %142 = vmatpush.msra.mxu0 0.0
    %143 = vmatpush.msra.mxu0 0.0
    %144 = vmatpush.msra.mxu0 0.0
    %145 = vmatpush.msra.mxu0 0.0
    %146 = vmatpush.msra.mxu0 0.0
    %147 = vmatpush.msra.mxu0 %v126
    %148 = vmatpush.msra.mxu0 %v125
    %149 = vmatpush.msra.mxu0 %v124
    %150 = vmatpush.msra.mxu0 %v123
    %151 = vmatmul.f32.gmra.mxu0 %v133
    %v152 = vpop.f32.mrf.mxu0
    %v153 = vadd.f32 %v129, %v152
    %154 = vdwg.mxu0
    %v155 = vmax.f32 %v153, 0.0
    %v156 = vld [vmem:[#allocation6] sm:$0xff]
    %v157 = vld [vmem:[#allocation6 + $0x8] sm:$0xff]
    %v158 = vld [vmem:[#allocation6 + $0x10] sm:$0xff]
    %v159 = vld [vmem:[#allocation6 + $0x18] sm:$0xff]
    %v160 = vld [vmem:[#allocation6 + $0x20] sm:$0xff]
    %v161 = vld [vmem:[#allocation6 + $0x28] sm:$0xff]
    %v162 = vld [vmem:[#allocation6 + $0x30] sm:$0xff]
    %v163 = vld [vmem:[#allocation6 + $0x38] sm:$0xff]
    %v164 = vld [vmem:[%s4] sm:$0x1]
    %v166 = vperm.slane %v164, 0
    %vm168 = vcmask 523264
    %v170 = vsel %vm168, %v155, 0
    %172 = vmatpush.msra.mxu0 0.0
    %173 = vmatpush.msra.mxu0 0.0
    %174 = vmatpush.msra.mxu0 0.0
    %175 = vmatpush.msra.mxu0 0.0
    %176 = vmatpush.msra.mxu0 0.0
    %177 = vmatpush.msra.mxu0 0.0
    %178 = vmatpush.msra.mxu0 0.0
    %179 = vmatpush.msra.mxu0 0.0
    %180 = vmatpush.msra.mxu0 %v163
    %181 = vmatpush.msra.mxu0 %v162
    %182 = vmatpush.msra.mxu0 %v161
    %183 = vmatpush.msra.mxu0 %v160
    %184 = vmatpush.msra.mxu0 %v159
    %185 = vmatpush.msra.mxu0 %v158
    %186 = vmatpush.msra.mxu0 %v157
    %187 = vmatpush.msra.mxu0 %v156
    %188 = vmatmul.f32.gmra.mxu0 %v170
    %v189 = vpop.f32.mrf.mxu0
    %v190 = vadd.f32 %v166, %v189
    %191 = vdwg.mxu0
    %v192 = vmax.f32 %v190, 0.0
    %v193 = vld [vmem:[#allocation7] sm:$0xff]
    %v194 = vld [vmem:[#allocation7 + $0x8] sm:$0xff]
    %v195 = vld [vmem:[#allocation7 + $0x10] sm:$0xff]
    %v196 = vld [vmem:[#allocation7 + $0x18] sm:$0xff]
    %v197 = vld [vmem:[#allocation7 + $0x20] sm:$0xff]
    %v198 = vld [vmem:[#allocation7 + $0x28] sm:$0xff]
    %v199 = vld [vmem:[#allocation7 + $0x30] sm:$0xff]
    %v200 = vld [vmem:[#allocation7 + $0x38] sm:$0xff]
    %v201 = vld [vmem:[#allocation7 + $0x40] sm:$0xff]
    %v202 = vld [vmem:[#allocation7 + $0x48] sm:$0xff]
    %v203 = vld [vmem:[#allocation7 + $0x50] sm:$0xff]
    %v204 = vld [vmem:[#allocation7 + $0x58] sm:$0xff]
    %v205 = vld [vmem:[#allocation7 + $0x60] sm:$0xff]
    %v206 = vld [vmem:[#allocation7 + $0x68] sm:$0xff]
    %v207 = vld [vmem:[#allocation7 + $0x70] sm:$0xff]
    %v208 = vld [vmem:[#allocation7 + $0x78] sm:$0xff]
    %v209 = vld [vmem:[%s6] sm:$0x3]
    %v211 = vperm.slane %v209, 0
    %v212 = vperm.slane %v209, 1
    %v216 = vsel %vm168, %v192, 0
    %218 = vmatpush.msra.mxu0 0.0
    %219 = vmatpush.msra.mxu0 0.0
    %220 = vmatpush.msra.mxu0 0.0
    %221 = vmatpush.msra.mxu0 0.0
    %222 = vmatpush.msra.mxu0 0.0
    %223 = vmatpush.msra.mxu0 0.0
    %224 = vmatpush.msra.mxu0 0.0
    %225 = vmatpush.msra.mxu0 0.0
    %226 = vmatpush.msra.mxu0 %v207
    %227 = vmatpush.msra.mxu0 %v205
    %228 = vmatpush.msra.mxu0 %v203
    %229 = vmatpush.msra.mxu0 %v201
    %230 = vmatpush.msra.mxu0 %v199
    %231 = vmatpush.msra.mxu0 %v197
    %232 = vmatpush.msra.mxu0 %v195
    %233 = vmatpush.msra.mxu0 %v193
    %234 = vmatmul.f32.gmra.mxu0 %v216
    %v235 = vpop.f32.mrf.mxu0
    %v236 = vadd.f32 %v211, %v235
    %237 = vdwg.mxu0
    %238 = vmatpush.msra.mxu0 0.0
    %239 = vmatpush.msra.mxu0 0.0
    %240 = vmatpush.msra.mxu0 0.0
    %241 = vmatpush.msra.mxu0 0.0
    %242 = vmatpush.msra.mxu0 0.0
    %243 = vmatpush.msra.mxu0 0.0
    %244 = vmatpush.msra.mxu0 0.0
    %245 = vmatpush.msra.mxu0 0.0
    %246 = vmatpush.msra.mxu0 %v208
    %247 = vmatpush.msra.mxu0 %v206
    %248 = vmatpush.msra.mxu0 %v204
    %249 = vmatpush.msra.mxu0 %v202
    %250 = vmatpush.msra.mxu0 %v200
    %251 = vmatpush.msra.mxu0 %v198
    %252 = vmatpush.msra.mxu0 %v196
    %253 = vmatpush.msra.mxu0 %v194
    %254 = vmatmul.f32.gmra.mxu0 %v216
    %v255 = vpop.f32.mrf.mxu0
    %v256 = vadd.f32 %v212, %v255
    %257 = vdwg.mxu0
    %v258 = vmax.f32 %v256, 0.0
    %v259 = vld [vmem:[#allocation9] sm:$0xff]
    %v260 = vld [vmem:[#allocation9 + $0x8] sm:$0xff]
    %v261 = vld [vmem:[#allocation9 + $0x10] sm:$0xff]
    %v262 = vld [vmem:[#allocation9 + $0x18] sm:$0xff]
    %v263 = vld [vmem:[#allocation9 + $0x20] sm:$0xff]
    %v264 = vld [vmem:[#allocation9 + $0x28] sm:$0xff]
    %v265 = vld [vmem:[#allocation9 + $0x30] sm:$0xff]
    %v266 = vld [vmem:[#allocation9 + $0x38] sm:$0xff]
    %v267 = vld [vmem:[#allocation9 + $0x40] sm:$0xff]
    %v268 = vld [vmem:[#allocation9 + $0x48] sm:$0xff]
    %v269 = vld [vmem:[#allocation9 + $0x50] sm:$0xff]
    %v270 = vld [vmem:[#allocation9 + $0x58] sm:$0xff]
    %v271 = vld [vmem:[#allocation9 + $0x60] sm:$0xff]
    %v272 = vld [vmem:[#allocation9 + $0x68] sm:$0xff]
    %v273 = vld [vmem:[#allocation9 + $0x70] sm:$0xff]
    %v274 = vld [vmem:[#allocation9 + $0x78] sm:$0xff]
    %v275 = vld [vmem:[#allocation10] sm:$0x1]
    %v277 = vperm.slane %v275, 0
    %279 = vmatpush.msra.mxu0 %v274
    %280 = vmatpush.msra.mxu0 %v273
    %281 = vmatpush.msra.mxu0 %v272
    %282 = vmatpush.msra.mxu0 %v271
    %283 = vmatpush.msra.mxu0 %v270
    %284 = vmatpush.msra.mxu0 %v269
    %285 = vmatpush.msra.mxu0 %v268
    %286 = vmatpush.msra.mxu0 %v267
    %287 = vmatpush.msra.mxu0 %v266
    %288 = vmatpush.msra.mxu0 %v265
    %289 = vmatpush.msra.mxu0 %v264
    %290 = vmatpush.msra.mxu0 %v263
    %291 = vmatpush.msra.mxu0 %v262
    %292 = vmatpush.msra.mxu0 %v261
    %293 = vmatpush.msra.mxu0 %v260
    %294 = vmatpush.msra.mxu0 %v259
    %295 = vmatmul.f32.gmra.mxu0 %v258
    %v296 = vpop.f32.mrf.mxu0
    %v297 = vadd.f32 %v277, %v296
    %298 = vdwg.mxu0
    %299 = vst [vmem:[%s9] sm:$0xff] %v236
    %300 = vst [vmem:[%s9 + $0x8] sm:$0xff] %v297
    // Predicated region
    $region62: #{_lambda_.1} parent=1 // pred_check
      _
    $region63: #{_lambda_.1} parent=1 // pred_check_branch
      %302 = sbr.rel (0) target = $region65
    $region64: #{_lambda_.1} parent=1 // pred_region
      _
    $region65: #{_lambda_.1} parent=1 // pred_fallthru
      _
    // Predicated region
    $region66: #{_lambda_.1} parent=1 // pred_check
      _
    $region67: #{_lambda_.1} parent=1 // pred_check_branch
      %304 = sbr.rel (0) target = $region69
    $region68: #{_lambda_.1} parent=1 // pred_region
      _
    $region69: #{_lambda_.1} parent=1 // pred_fallthru
      _
    %305 = vsyncpa [#allocation3], 1
    %306 = vsyncpa [#allocation5], 1
    %307 = vsyncpa [#allocation8], 1
    %308 = vsyncpa [#allocation11], 1

</llo_original>
